<compile_context>
chip_gen: v6e
topology: v6e:2x2x1
jax: 0.10.0
libtpu: 0.0.40
codegen_flags: <defaults>
</compile_context>

<pallas_src>
import jax
import jax.numpy as jnp
from jax import lax
from jax.experimental import pallas as pl
from jax.experimental.pallas import tpu as pltpu


def _rho_kernel(x_ref, w_ref, b_ref, o_ref):
    # x_ref: (TB, E), w_ref: (A, E), b_ref: (A, 1), o_ref: (A, TB)
    x = x_ref[...].astype(jnp.float32)
    w = w_ref[...].astype(jnp.float32)
    # Weight-stationary, lane-dense logits: (A, E) . (TB, E)^T -> (A, TB) on MXU.
    logits = lax.dot_general(
        w, x,
        dimension_numbers=(((1,), (1,)), ((), ())),
        preferred_element_type=jnp.float32,
    )
    logits = logits + b_ref[...].astype(jnp.float32)      # (A, 1) lane-broadcast
    # Numerically stable softmax over the action (sublane) axis.
    m = jnp.max(logits, axis=0, keepdims=True)            # (1, TB)
    e = jnp.exp(logits - m)                                # EUP, packed vregs
    denom = jnp.sum(e, axis=0, keepdims=True)              # (1, TB)
    # Exact reciprocal: negligible cost now that the kernel is HBM-bound, and
    # keeps each softmax column summing to 1 at f32 precision.
    o_ref[...] = (e * pl.reciprocal(denom, approx=False)).astype(o_ref.dtype)


def prepare_params(weight, bias):
    """One-time parameter prep (init time, NOT per forward call).

    weight: (A, E) as in nn.Linear; bias: (A,).
    Returns w: (A, E) unchanged, b: (A, 1) so the kernel's (A, TB) logits get a
    lane-broadcast bias add.
    """
    A, E = weight.shape
    assert bias.shape == (A,)
    return jnp.asarray(weight), jnp.asarray(bias).reshape(A, 1)


def _round_up(n, m):
    return -(-n // m) * m


def rho_forward(h_s, w, b, *, tb=4096, out_dtype=jnp.float32,
                return_action_major=False):
    """Forward pass of Rho: softmax(h_s.reshape(B, -1) @ w.T + b, axis=1).

    h_s: (B, ...) flattened to (B, E).  For large, HBM-bound batches pass h_s
         (and optionally w) as bfloat16 produced upstream; accumulation and
         softmax stay in f32 in-kernel.
    w:   (A, E), b: (A, 1) from prepare_params().
    Returns (B, A) probabilities (or the kernel-native (A, B) slab if
    return_action_major=True, skipping the tiny transpose).
    """
    B = h_s.shape[0]
    x = h_s.reshape(B, -1)                       # .view(B, -1); no-op for 2-D input
    A, E = w.shape
    assert x.shape == (B, E) and b.shape == (A, 1)

    # Batch tile.  TB is the *lane* dimension of the (A, TB) output block, so
    # it must be a multiple of 128 unless it covers the whole batch.  Cap it so
    # the grid has >= 2 steps whenever possible ("parallel" axis -> both
    # TensorCores get work on v7x); harmless on single-TC v5e/v6e.
    tb_eff = max(128, (int(tb) // 128) * 128)
    if B <= 128:
        TB = B                                   # single full-batch tile
    else:
        TB = min(tb_eff, _round_up(pl.cdiv(B, 2), 128))
    grid = (pl.cdiv(B, TB),)

    x_item = jnp.dtype(x.dtype).itemsize
    w_item = jnp.dtype(w.dtype).itemsize
    o_item = jnp.dtype(out_dtype).itemsize

    cost = pl.CostEstimate(
        flops=2 * B * E * A,
        transcendentals=B * A,                                    # exp per logit
        bytes_accessed=B * E * x_item + A * E * w_item + A * 4 + B * A * o_item,
    )

    # Double-buffered footprint: x tiles + out tiles + resident params.
    vmem_need = (2 * TB * E * x_item) + (2 * A * TB * o_item) \
        + (A * E * w_item) + (A * 4)
    cp_kwargs = dict(dimension_semantics=("parallel",))           # megacore on v7x
    if vmem_need > 12 * 1024 * 1024:
        # v5e scoped-VMEM default is 16 MiB; only huge user-chosen tb gets here.
        cp_kwargs["vmem_limit_bytes"] = int(vmem_need * 2)
    compiler_params = pltpu.CompilerParams(**cp_kwargs)

    out_ab = pl.pallas_call(
        _rho_kernel,
        out_shape=jax.ShapeDtypeStruct((A, B), out_dtype),
        grid=grid,
        in_specs=[
            pl.BlockSpec((TB, E), lambda i: (i, 0)),   # x: tiled over batch
            pl.BlockSpec((A, E), lambda i: (0, 0)),    # weight: VMEM-resident
            pl.BlockSpec((A, 1), lambda i: (0, 0)),    # bias:   VMEM-resident
        ],
        out_specs=pl.BlockSpec((A, TB), lambda i: (0, i)),  # lane-dense output
        compiler_params=compiler_params,
        cost_estimate=cost,
    )(x, w, b)

    if return_action_major:
        return out_ab                      # (A, B) — consumer-native layout
    # Tiny (8, B) transpose back to the module's (B, A) convention: B*A*4
    # bytes, ~6% of the x read even at large B.
    return out_ab.T


if __name__ == "__main__":
    embeddings_size = 128
    n_actions = 8
    batch = 2

    key = jax.random.PRNGKey(0)
    k_x, k_w, k_b, k_x2 = jax.random.split(key, 4)

    # Deterministic parameter init (shapes from nn.Linear(128, 8)).
    bound = 1.0 / (embeddings_size ** 0.5)
    weight = jax.random.uniform(
        k_w, (n_actions, embeddings_size), jnp.float32, -bound, bound)
    bias = jax.random.uniform(k_b, (n_actions,), jnp.float32, -bound, bound)

    # One-time parameter prep (init time).
    w, b = prepare_params(weight, bias)

    # --- Small test matching the module defaults (B=2, E=128, A=8) ----------
    h_s = jax.random.normal(k_x, (batch, embeddings_size), jnp.float32)
    out = jax.block_until_ready(rho_forward(h_s, w, b))

    ref = jax.nn.softmax(h_s.reshape(batch, -1) @ weight.T + bias, axis=1)
    assert out.shape == (batch, n_actions)
    assert jnp.allclose(out, ref, atol=1e-4, rtol=1e-4)
    assert jnp.allclose(jnp.sum(out, axis=1), 1.0, atol=1e-4)

    # --- Exercise the batch grid: multiple tiles + a partial trailing tile --
    B2 = 384                              # TB=256 -> grid=(2,), second tile partial
    h_s2 = jax.random.normal(k_x2, (B2, embeddings_size), jnp.float32)
    out2 = jax.block_until_ready(rho_forward(h_s2, w, b))
    ref2 = jax.nn.softmax(h_s2 @ weight.T + bias, axis=1)
    assert out2.shape == (B2, n_actions)
    assert jnp.allclose(out2, ref2, atol=1e-4, rtol=1e-4)
    assert jnp.allclose(jnp.sum(out2, axis=1), 1.0, atol=1e-4)

    # --- Action-major fast path (skips the tiny transpose) ------------------
    out2_am = jax.block_until_ready(
        rho_forward(h_s2, w, b, return_action_major=True))
    assert out2_am.shape == (n_actions, B2)
    assert jnp.allclose(out2_am.T, ref2, atol=1e-4, rtol=1e-4)

    print("KERNEL_OK")
</pallas_src>

<mosaic_0001>
module attributes {stable_mosaic.version = 11 : i64} {
  func.func @_rho_kernel(%arg0: i32, %arg1: memref<2x128xf32, #tpu.memory_space<vmem>>, %arg2: memref<8x128xf32, #tpu.memory_space<vmem>>, %arg3: memref<8x1xf32, #tpu.memory_space<vmem>>, %arg4: memref<8x2xf32, #tpu.memory_space<vmem>>) attributes {dimension_semantics = [#tpu.dimension_semantics<parallel>], iteration_bounds = array<i64: 1>, scalar_prefetch = 0 : i64, scratch_operands = 0 : i64, tpu.core_type = #tpu.core_type<tc>, window_params = [{transform_indices = @transform_0, window_bounds = array<i64: 2, 128>}, {pipeline_mode = #tpu.pipeline_mode<synchronous>, transform_indices = @transform_1, window_bounds = array<i64: 8, 128>}, {pipeline_mode = #tpu.pipeline_mode<synchronous>, transform_indices = @transform_2, window_bounds = array<i64: 8, 1>}, {transform_indices = @transform_3, window_bounds = array<i64: 8, 2>}]} {
    %c0 = arith.constant 0 : index
    %c0_0 = arith.constant 0 : index
    %0 = vector.load %arg1[%c0, %c0_0] : memref<2x128xf32, #tpu.memory_space<vmem>>, vector<2x128xf32>
    %c0_1 = arith.constant 0 : index
    %c0_2 = arith.constant 0 : index
    %1 = vector.load %arg2[%c0_1, %c0_2] : memref<8x128xf32, #tpu.memory_space<vmem>>, vector<8x128xf32>
    %cst = arith.constant dense<0.000000e+00> : vector<8x2xf32>
    %2 = tpu.matmul %1, %0, %cst {dimension_numbers = #tpu.dot_dimension_numbers<[1], [1], [0], [0], [0, 0, 1, 0], [], []>} : vector<8x128xf32>, vector<2x128xf32>, vector<8x2xf32> -> vector<8x2xf32>
    %c0_3 = arith.constant 0 : index
    %c0_4 = arith.constant 0 : index
    %3 = vector.load %arg3[%c0_3, %c0_4] : memref<8x1xf32, #tpu.memory_space<vmem>>, vector<8x1xf32>
    %4 = vector.broadcast %3 : vector<8x1xf32> to vector<8x2xf32>
    %5 = arith.addf %2, %4 : vector<8x2xf32>
    %cst_5 = arith.constant dense<0xFF800000> : vector<2xf32>
    %6 = vector.multi_reduction <maximumf>, %5, %cst_5 [0] : vector<8x2xf32> to vector<2xf32>
    %7 = vector.shape_cast %6 : vector<2xf32> to vector<1x2xf32>
    %8 = vector.broadcast %7 : vector<1x2xf32> to vector<8x2xf32>
    %9 = arith.subf %5, %8 : vector<8x2xf32>
    %10 = math.exp %9 : vector<8x2xf32>
    %cst_6 = arith.constant dense<0.000000e+00> : vector<2xf32>
    %11 = vector.multi_reduction <add>, %10, %cst_6 [0] : vector<8x2xf32> to vector<2xf32>
    %12 = vector.shape_cast %11 : vector<2xf32> to vector<1x2xf32>
    %13 = tpu.reciprocal %12 : vector<1x2xf32> -> vector<1x2xf32>
    %14 = vector.broadcast %13 : vector<1x2xf32> to vector<8x2xf32>
    %15 = arith.mulf %10, %14 : vector<8x2xf32>
    %c0_7 = arith.constant 0 : index
    %c0_8 = arith.constant 0 : index
    %16 = vector.load %arg4[%c0_7, %c0_8] : memref<8x2xf32, #tpu.memory_space<vmem>>, vector<8x2xf32>
    tpu.vector_store %arg4[%c0_7, %c0_8], %15 {strides = array<i32>} : memref<8x2xf32, #tpu.memory_space<vmem>>, vector<8x2xf32>,
    return
  }
  func.func @transform_0(%arg0: i32) -> (i32, i32) {
    %c0_i32 = arith.constant 0 : i32
    %c0_i32_0 = arith.constant 0 : i32
    return %arg0, %c0_i32 : i32, i32
  }
  func.func @transform_1(%arg0: i32) -> (i32, i32) {
    %c0_i32 = arith.constant 0 : i32
    %c0_i32_0 = arith.constant 0 : i32
    %c0_i32_1 = arith.constant 0 : i32
    return %c0_i32, %c0_i32_0 : i32, i32
  }
  func.func @transform_2(%arg0: i32) -> (i32, i32) {
    %c0_i32 = arith.constant 0 : i32
    %c0_i32_0 = arith.constant 0 : i32
    %c0_i32_1 = arith.constant 0 : i32
    return %c0_i32, %c0_i32_0 : i32, i32
  }
  func.func @transform_3(%arg0: i32) -> (i32, i32) {
    %c0_i32 = arith.constant 0 : i32
    %c0_i32_0 = arith.constant 0 : i32
    return %c0_i32, %arg0 : i32, i32
  }
}

</mosaic_0001>

<llo_original>
// kernel: tpu_custom_call.1
$region0: #{tpu_custom_call.1}
  #allocation0 [shape = 'u32[]', space=smem, size = 0x4, offset = 0x4, fixed_abs, tag = 'smem constant byte address 0x4 - core index']
  #allocation1 [shape = 'u32[144,128]{1,0:T(1,128)}', space=vmem, size = 0x12000, scoped, tag = 'internal scratch']
  %s0 = inlined_call_operand.vmem [shape: f32[2,128], index: 0, kind: input, shape index: {}]
  %s1 = inlined_call_operand.vmem [shape: f32[8,128], index: 1, kind: input, shape index: {}]
  %s2 = inlined_call_operand.vmem [shape: f32[8,1], index: 2, kind: input, shape index: {}]
  %s3 = inlined_call_operand.vmem [shape: f32[8,2], index: 3, kind: output, shape index: {}]
  %s4 = sld [smem:[#allocation0]]
  $region22: #{tpu_custom_call.1} parent=0
    _
  %s6 = ssub.s32 1, %s4
  %s7 = scalar_select 0, %s6, %s4
  // Predicated region
  $region2: #{tpu_custom_call.1} parent=0 // pred_check
    _
  $region3: #{tpu_custom_call.1} parent=0 // pred_check_branch
    %9 = sbr.rel (0) target = $region5
  $region4: #{tpu_custom_call.1} parent=0 // pred_region
    _
  $region5: #{tpu_custom_call.1} parent=0 // pred_fallthru
    _
  // Predicated region
  $region6: #{tpu_custom_call.1} parent=0 // pred_check
    _
  $region7: #{tpu_custom_call.1} parent=0 // pred_check_branch
    %11 = sbr.rel (0) target = $region9
  $region8: #{tpu_custom_call.1} parent=0 // pred_region
    _
  $region9: #{tpu_custom_call.1} parent=0 // pred_fallthru
    _
  // Predicated region
  $region10: #{tpu_custom_call.1} parent=0 // pred_check
    _
  $region11: #{tpu_custom_call.1} parent=0 // pred_check_branch
    %13 = sbr.rel (0) target = $region13
  $region12: #{tpu_custom_call.1} parent=0 // pred_region
    _
  $region13: #{tpu_custom_call.1} parent=0 // pred_fallthru
    _
  %v14 = vld [vmem:[%s0] sm:$0x3]
  %v15 = vld [vmem:[%s1] sm:$0xff]
  %v16 = vld [vmem:[%s2] sm:$0xff]
  %18 = vset.pattern.permute.xlu0 0
  %19 = vperm.xlu0 %18, %v16
  %v20 = vpop.permute.xlu0 %19
  %22 = vmatprep.subr.mxu0 0.0
  %23 = vmatpush1.xpose.msra.mxu0 0.0
  %24 = vmatprep.subr.mxu0 0.0
  %25 = vmatpush1.xpose.msra.mxu0 0.0
  %26 = vmatprep.subr.mxu0 0.0
  %27 = vmatpush1.xpose.msra.mxu0 0.0
  %28 = vmatprep.subr.mxu0 0.0
  %29 = vmatpush1.xpose.msra.mxu0 0.0
  %30 = vmatprep.subr.mxu0 0.0
  %31 = vmatpush1.xpose.msra.mxu0 0.0
  %32 = vmatprep.subr.mxu0 0.0
  %33 = vmatpush1.xpose.msra.mxu0 0.0
  %34 = vmatprep.subr.mxu0 0.0
  %35 = vmatpush1.xpose.msra.mxu0 0.0
  %36 = vmatprep.subr.mxu0 0.0
  %37 = vmatpush1.xpose.msra.mxu0 0.0
  %38 = vmatprep.subr.mxu0 0.0
  %39 = vmatpush1.xpose.msra.mxu0 0.0
  %40 = vmatprep.subr.mxu0 0.0
  %41 = vmatpush1.xpose.msra.mxu0 0.0
  %42 = vmatprep.subr.mxu0 0.0
  %43 = vmatpush1.xpose.msra.mxu0 0.0
  %44 = vmatprep.subr.mxu0 0.0
  %45 = vmatpush1.xpose.msra.mxu0 0.0
  %46 = vmatprep.subr.mxu0 0.0
  %47 = vmatpush1.xpose.msra.mxu0 0.0
  %48 = vmatprep.subr.mxu0 0.0
  %49 = vmatpush1.xpose.msra.mxu0 0.0
  %50 = vmatprep.subr.mxu0 0.0
  %51 = vmatpush1.xpose.msra.mxu0 0.0
  %52 = vmatprep.subr.mxu0 0.0
  %53 = vmatpush1.xpose.msra.mxu0 %v14
  %54 = vmatprep.subr.mxu0 0.0
  %55 = vmatpush2.xpose.msra.mxu0 0.0
  %56 = vmatprep.subr.mxu0 0.0
  %57 = vmatpush2.xpose.msra.mxu0 0.0
  %58 = vmatprep.subr.mxu0 0.0
  %59 = vmatpush2.xpose.msra.mxu0 0.0
  %60 = vmatprep.subr.mxu0 0.0
  %61 = vmatpush2.xpose.msra.mxu0 0.0
  %62 = vmatprep.subr.mxu0 0.0
  %63 = vmatpush2.xpose.msra.mxu0 0.0
  %64 = vmatprep.subr.mxu0 0.0
  %65 = vmatpush2.xpose.msra.mxu0 0.0
  %66 = vmatprep.subr.mxu0 0.0
  %67 = vmatpush2.xpose.msra.mxu0 0.0
  %68 = vmatprep.subr.mxu0 0.0
  %69 = vmatpush2.xpose.msra.mxu0 0.0
  %70 = vmatprep.subr.mxu0 0.0
  %71 = vmatpush2.xpose.msra.mxu0 0.0
  %72 = vmatprep.subr.mxu0 0.0
  %73 = vmatpush2.xpose.msra.mxu0 0.0
  %74 = vmatprep.subr.mxu0 0.0
  %75 = vmatpush2.xpose.msra.mxu0 0.0
  %76 = vmatprep.subr.mxu0 0.0
  %77 = vmatpush2.xpose.msra.mxu0 0.0
  %78 = vmatprep.subr.mxu0 0.0
  %79 = vmatpush2.xpose.msra.mxu0 0.0
  %80 = vmatprep.subr.mxu0 0.0
  %81 = vmatpush2.xpose.msra.mxu0 0.0
  %82 = vmatprep.subr.mxu0 0.0
  %83 = vmatpush2.xpose.msra.mxu0 0.0
  %84 = vmatprep.subr.mxu0 0.0
  %85 = vmatpush2.xpose.msra.mxu0 0.0
  %86 = vmatprep.mubr.f32.mxu0 0.0
  %87 = vmatmul.mubr.f32.gmra.mxu0 %v15
  %v88 = vpop.f32.mrf.mxu0
  %v89 = vadd.f32 %v20, %v88
  %v90 = vpop.f32.mrf.mxu0
  %91 = vdwg.mxu0
  %vm92 = vcmask 15360
  %v93 = vsel %vm92, %v89, -inf
  %v94 = vrot.slane %v93, 4
  %v95 = vmax.f32 %v93, %v94
  %v96 = vrot.slane %v95, 2
  %v97 = vmax.f32 %v95, %v96
  %v98 = vrot.slane %v97, 1
  %v99 = vmax.f32 %v97, %v98
  %v100 = vsub.f32 %v89, %v99
  %v101 = vmul.f32 %v100, 1.442695
  %v102 = vpow.pop %v101
  %v103 = vsel %vm92, %v102, 0.0
  %v104 = vrot.slane %v103, 4
  %v105 = vadd.f32 %v103, %v104
  %v106 = vrot.slane %v105, 2
  %v107 = vadd.f32 %v105, %v106
  %v108 = vrot.slane %v107, 1
  %v109 = vadd.f32 %v107, %v108
  %v110 = vrcp.pop %v109
  %v111 = vmul.f32 %v102, %v110
  %112 = vst.msk [vmem:[%s3] sm:$0xff] %vm92, %v111
  // Predicated region
  $region14: #{tpu_custom_call.1} parent=0 // pred_check
    _
  $region15: #{tpu_custom_call.1} parent=0 // pred_check_branch
    %114 = sbr.rel (0) target = $region17
  $region16: #{tpu_custom_call.1} parent=0 // pred_region
    _
  $region17: #{tpu_custom_call.1} parent=0 // pred_fallthru
    _
  // Predicated region
  $region18: #{tpu_custom_call.1} parent=0 // pred_check
    _
  $region19: #{tpu_custom_call.1} parent=0 // pred_check_branch
    %116 = sbr.rel (0) target = $region21
  $region20: #{tpu_custom_call.1} parent=0 // pred_region
    _
  $region21: #{tpu_custom_call.1} parent=0 // pred_fallthru
    _

</llo_original>
